<compile_context>
chip_gen: v5e
topology: v5e:2x2
jax: 0.10.0
libtpu: 0.0.40
codegen_flags: <defaults>
</compile_context>

<pallas_src>
import jax
import jax.numpy as jnp
from jax import lax
from jax.experimental import pallas as pl
from jax.experimental.pallas import tpu as pltpu


_DEFAULT_TILE = 8192  # atoms per grid step; 8192 * 16 descriptors * 4 B = 512 KiB


def _round_up(v, m):
    return ((v + m - 1) // m) * m


def _tiling(n, tile_n):
    """Pick an atom tile satisfying Mosaic (8, 128) block constraints."""
    n8 = _round_up(n, 8)
    if n8 <= tile_n:
        # Single block covering all atoms (block == full padded array dims).
        return n8, 1
    # Multi-block: tile must be 128-aligned so the (1, tile) output block and
    # the (1, tile) types block are lane-dense and legal.
    tile = max(128, (tile_n // 128) * 128)
    return tile, pl.cdiv(n, tile)


def _full_spec(arr):
    """Whole (small) parameter array resident in VMEM for every grid step."""
    ndim = arr.ndim
    return pl.BlockSpec(arr.shape, lambda i: (0,) * ndim)


def _prep_params(params):
    """(w, b) pairs in (in,out)/(1,out) layout -> kernel layout (w3 as (1,H2) row)."""
    w1, b1, w2, b2, w3, b3 = params
    return (jnp.asarray(w1), jnp.asarray(b1),
            jnp.asarray(w2), jnp.asarray(b2),
            jnp.asarray(w3).reshape(1, -1), jnp.asarray(b3).reshape(1, 1))


# ----------------------------- Pallas kernels --------------------------------

def _mlp_kernel(x_ref, w1_ref, b1_ref, w2_ref, b2_ref, w3_ref, b3_ref, o_ref):
    """One atom tile: Linear -> Sigmoid -> Linear -> Sigmoid -> Linear(width 1)."""
    x = x_ref[...].astype(jnp.float32)                               # (tile, D)
    h = jnp.dot(x, w1_ref[...], preferred_element_type=jnp.float32) + b1_ref[...]
    h = jax.nn.sigmoid(h)                                            # (tile, H1)
    h = jnp.dot(h, w2_ref[...], preferred_element_type=jnp.float32) + b2_ref[...]
    h = jax.nn.sigmoid(h)                                            # (tile, H2)
    # Final width-1 layer produced directly as a lane-dense row:
    #   (1, H2) contracted with (tile, H2) on the H2 axis -> (1, tile)
    y = lax.dot_general(w3_ref[...], h, (((1,), (1,)), ((), ())),
                        preferred_element_type=jnp.float32) + b3_ref[...]
    o_ref[...] = y.astype(o_ref.dtype)                               # (1, tile)


def _mlp_multi_kernel(t_ref, x_ref, w1_ref, b1_ref, w2_ref, b2_ref,
                      w3_ref, b3_ref, o_ref):
    """All element networks evaluated on one atom tile; selected per atom by type."""
    x = x_ref[...].astype(jnp.float32)                               # (tile, D)
    t = t_ref[...]                                                   # (1, tile) int32
    acc = jnp.zeros(o_ref.shape, jnp.float32)                        # (1, tile)
    n_elem = w1_ref.shape[0]
    for e in range(n_elem):                                          # static unroll (small)
        h = jnp.dot(x, w1_ref[e], preferred_element_type=jnp.float32) + b1_ref[e]
        h = jax.nn.sigmoid(h)
        h = jnp.dot(h, w2_ref[e], preferred_element_type=jnp.float32) + b2_ref[e]
        h = jax.nn.sigmoid(h)
        y = lax.dot_general(w3_ref[e], h, (((1,), (1,)), ((), ())),
                            preferred_element_type=jnp.float32) + b3_ref[e]
        acc = jnp.where(t == e, y, acc)
    o_ref[...] = acc.astype(o_ref.dtype)


# ------------------------------- wrappers ------------------------------------

def mlp_forward_pallas(x, params, *, tile_n=_DEFAULT_TILE):
    """Per-atom-scalar MLP: x (N, D) -> (N,).  multi_element_option == 1 path."""
    w1, b1, w2, b2, w3r, b3 = _prep_params(params)
    n, d = x.shape
    tile, num_tiles = _tiling(n, tile_n)
    if n < tile:  # tiny inputs only; large N uses partial last blocks (no x copy)
        x = jnp.pad(x, ((0, tile - n), (0, 0)))

    out = pl.pallas_call(
        _mlp_kernel,
        out_shape=jax.ShapeDtypeStruct((1, num_tiles * tile), jnp.float32),
        grid_spec=pltpu.PrefetchScalarGridSpec(
            num_scalar_prefetch=0,
            grid=(num_tiles,),
            in_specs=[
                pl.BlockSpec((tile, d), lambda i: (i, 0)),   # x tile (atoms on sublanes)
                _full_spec(w1), _full_spec(b1),
                _full_spec(w2), _full_spec(b2),
                _full_spec(w3r), _full_spec(b3),
            ],
            out_specs=pl.BlockSpec((1, tile), lambda i: (0, i)),  # lane-dense row
        ),
        compiler_params=pltpu.CompilerParams(dimension_semantics=("parallel",)),
    )(x, w1, b1, w2, b2, w3r, b3)

    return out.reshape(-1)[:n]  # == torch .flatten()


def mlp_forward_multi_pallas(x, types, params_per_elem, *, tile_n=_DEFAULT_TILE):
    """Fused per-element MLPs: one pass over x, per-atom network selection in-kernel."""
    prepped = [_prep_params(p) for p in params_per_elem]
    w1s, b1s, w2s, b2s, w3s, b3s = (jnp.stack(t) for t in zip(*prepped))

    n, d = x.shape
    tile, num_tiles = _tiling(n, tile_n)
    if n < tile:
        x = jnp.pad(x, ((0, tile - n), (0, 0)))

    # Lane-dense types row, padded with -1 (matches no element) past n.
    t_row = jnp.full((num_tiles * tile,), -1, dtype=jnp.int32)
    t_row = t_row.at[:n].set(types.astype(jnp.int32)).reshape(1, -1)

    out = pl.pallas_call(
        _mlp_multi_kernel,
        out_shape=jax.ShapeDtypeStruct((1, num_tiles * tile), jnp.float32),
        grid_spec=pltpu.PrefetchScalarGridSpec(
            num_scalar_prefetch=0,
            grid=(num_tiles,),
            in_specs=[
                pl.BlockSpec((1, tile), lambda i: (0, i)),   # types (lane-dense)
                pl.BlockSpec((tile, d), lambda i: (i, 0)),   # x tile
                _full_spec(w1s), _full_spec(b1s),
                _full_spec(w2s), _full_spec(b2s),
                _full_spec(w3s), _full_spec(b3s),
            ],
            out_specs=pl.BlockSpec((1, tile), lambda i: (0, i)),
        ),
        compiler_params=pltpu.CompilerParams(dimension_semantics=("parallel",)),
    )(t_row, x, w1s, b1s, w2s, b2s, w3s, b3s)

    return out.reshape(-1)[:n]


# ------------------------- FitTorchPAS equivalent ----------------------------

def make_network_params(key, descriptor_count, hidden=(32, 16)):
    """Deterministically initialize one MLP: D -> hidden[0] -> hidden[1] -> 1."""
    sizes = (descriptor_count,) + tuple(hidden) + (1,)
    keys = jax.random.split(key, 2 * (len(sizes) - 1))
    params = []
    for li in range(len(sizes) - 1):
        fan_in, fan_out = sizes[li], sizes[li + 1]
        bound = 1.0 / jnp.sqrt(fan_in)
        w = jax.random.uniform(keys[2 * li], (fan_in, fan_out), jnp.float32, -bound, bound)
        b = jax.random.uniform(keys[2 * li + 1], (1, fan_out), jnp.float32, -bound, bound)
        params += [w, b]
    return tuple(params)


class FitTorchPASPallas:
    """JAX/Pallas re-implementation of FitTorchPAS.forward."""

    def __init__(self, networks_params, descriptor_count, n_elements=1,
                 multi_element_option=1):
        # networks_params: list of (w1, b1, w2, b2, w3, b3), one per element type,
        # weights in (in_features, out_features) layout and biases (1, out).
        # TODO(synk): FitSNAP's create_torch_network can emit other depths /
        # activations; this kernel hard-codes the default 3-Linear sigmoid MLP.
        self.networks = networks_params
        self.desc_len = descriptor_count
        self.n_elem = n_elements
        self.multi_element_option = multi_element_option

    def forward(self, x, atoms_per_structure, types):
        # atoms_per_structure is unused by the torch PAS forward; kept for API parity.
        del atoms_per_structure
        if self.multi_element_option == 1:
            return mlp_forward_pallas(x, self.networks[0])
        elif self.multi_element_option == 2:
            return mlp_forward_multi_pallas(x, types, self.networks[:self.n_elem])
        raise ValueError("unsupported multi_element_option")


# ---------------------------- reference (plain JAX) ---------------------------

def mlp_forward_ref(x, params):
    w1, b1, w2, b2, w3, b3 = params
    h = jax.nn.sigmoid(x @ w1 + b1)
    h = jax.nn.sigmoid(h @ w2 + b2)
    return (h @ w3 + b3).reshape(-1)


# ----------------------------------- main -------------------------------------

if __name__ == "__main__":
    key = jax.random.PRNGKey(0)
    k_x, k_net0, k_net1, k_x2, k_t2 = jax.random.split(key, 5)

    descriptor_count = 16
    n_elements = 2
    net_params = [
        make_network_params(k_net0, descriptor_count),
        make_network_params(k_net1, descriptor_count),
    ]

    # --- small batch: single-block path ---
    num_atoms = 12
    x = jax.random.normal(k_x, (num_atoms, descriptor_count), jnp.float32)
    atoms_per_structure = jnp.array([5, 7], dtype=jnp.int32)
    types = jnp.array([0, 1, 0, 0, 1, 1, 0, 1, 0, 1, 1, 0], dtype=jnp.int32)

    model1 = FitTorchPASPallas(net_params, descriptor_count,
                               n_elements=1, multi_element_option=1)
    out1 = jax.block_until_ready(model1.forward(x, atoms_per_structure, types))
    ref1 = mlp_forward_ref(x, net_params[0])
    assert out1.shape == (num_atoms,)
    assert jnp.allclose(out1, ref1, atol=1e-5, rtol=1e-5)

    model2 = FitTorchPASPallas(net_params, descriptor_count,
                               n_elements=n_elements, multi_element_option=2)
    out2 = jax.block_until_ready(model2.forward(x, atoms_per_structure, types))
    ref2 = jnp.where(types == 0,
                     mlp_forward_ref(x, net_params[0]),
                     mlp_forward_ref(x, net_params[1]))
    assert out2.shape == (num_atoms,)
    assert jnp.allclose(out2, ref2, atol=1e-5, rtol=1e-5)

    # --- larger batch: multi-tile path with a partial last block (no x copy) ---
    num_atoms_b = 300
    xb = jax.random.normal(k_x2, (num_atoms_b, descriptor_count), jnp.float32)
    types_b = jax.random.randint(k_t2, (num_atoms_b,), 0, n_elements, jnp.int32)

    out3 = jax.block_until_ready(mlp_forward_pallas(xb, net_params[0], tile_n=128))
    ref3 = mlp_forward_ref(xb, net_params[0])
    assert out3.shape == (num_atoms_b,)
    assert jnp.allclose(out3, ref3, atol=1e-5, rtol=1e-5)

    out4 = jax.block_until_ready(
        mlp_forward_multi_pallas(xb, types_b, net_params, tile_n=128))
    ref4 = jnp.where(types_b == 0,
                     mlp_forward_ref(xb, net_params[0]),
                     mlp_forward_ref(xb, net_params[1]))
    assert out4.shape == (num_atoms_b,)
    assert jnp.allclose(out4, ref4, atol=1e-5, rtol=1e-5)

    print("KERNEL_OK")
</pallas_src>

<mosaic_0001>
module attributes {stable_mosaic.version = 11 : i64} {
  func.func @_mlp_kernel(%arg0: i32, %arg1: memref<16x16xf32, #tpu.memory_space<vmem>>, %arg2: memref<16x32xf32, #tpu.memory_space<vmem>>, %arg3: memref<1x32xf32, #tpu.memory_space<vmem>>, %arg4: memref<32x16xf32, #tpu.memory_space<vmem>>, %arg5: memref<1x16xf32, #tpu.memory_space<vmem>>, %arg6: memref<1x16xf32, #tpu.memory_space<vmem>>, %arg7: memref<1x1xf32, #tpu.memory_space<vmem>>, %arg8: memref<1x16xf32, #tpu.memory_space<vmem>>) attributes {dimension_semantics = [#tpu.dimension_semantics<parallel>], iteration_bounds = array<i64: 1>, scalar_prefetch = 0 : i64, scratch_operands = 0 : i64, tpu.core_type = #tpu.core_type<tc>, window_params = [{transform_indices = @transform_0, window_bounds = array<i64: 16, 16>}, {pipeline_mode = #tpu.pipeline_mode<synchronous>, transform_indices = @transform_1, window_bounds = array<i64: 16, 32>}, {pipeline_mode = #tpu.pipeline_mode<synchronous>, transform_indices = @transform_2, window_bounds = array<i64: 1, 32>}, {pipeline_mode = #tpu.pipeline_mode<synchronous>, transform_indices = @transform_3, window_bounds = array<i64: 32, 16>}, {pipeline_mode = #tpu.pipeline_mode<synchronous>, transform_indices = @transform_4, window_bounds = array<i64: 1, 16>}, {pipeline_mode = #tpu.pipeline_mode<synchronous>, transform_indices = @transform_5, window_bounds = array<i64: 1, 16>}, {pipeline_mode = #tpu.pipeline_mode<synchronous>, transform_indices = @transform_6, window_bounds = array<i64: 1, 1>}, {transform_indices = @transform_7, window_bounds = array<i64: 1, 16>}]} {
    %c0 = arith.constant 0 : index
    %c0_0 = arith.constant 0 : index
    %0 = vector.load %arg1[%c0, %c0_0] : memref<16x16xf32, #tpu.memory_space<vmem>>, vector<16x16xf32>
    %c0_1 = arith.constant 0 : index
    %c0_2 = arith.constant 0 : index
    %1 = vector.load %arg2[%c0_1, %c0_2] : memref<16x32xf32, #tpu.memory_space<vmem>>, vector<16x32xf32>
    %cst = arith.constant dense<0.000000e+00> : vector<16x32xf32>
    %2 = tpu.matmul %0, %1, %cst {dimension_numbers = #tpu.dot_dimension_numbers<[1], [0], [0], [1], [0, 0, 1, 1], [], []>} : vector<16x16xf32>, vector<16x32xf32>, vector<16x32xf32> -> vector<16x32xf32>
    %c0_3 = arith.constant 0 : index
    %c0_4 = arith.constant 0 : index
    %3 = vector.load %arg3[%c0_3, %c0_4] : memref<1x32xf32, #tpu.memory_space<vmem>>, vector<1x32xf32>
    %4 = vector.broadcast %3 : vector<1x32xf32> to vector<16x32xf32>
    %5 = arith.addf %2, %4 : vector<16x32xf32>
    %6 = arith.negf %5 : vector<16x32xf32>
    %7 = math.exp %6 : vector<16x32xf32>
    %cst_5 = arith.constant 1.000000e+00 : f32
    %8 = vector.broadcast %cst_5 : f32 to vector<16x32xf32>
    %9 = arith.addf %8, %7 : vector<16x32xf32>
    %10 = arith.divf %8, %9 : vector<16x32xf32>
    %c0_6 = arith.constant 0 : index
    %c0_7 = arith.constant 0 : index
    %11 = vector.load %arg4[%c0_6, %c0_7] : memref<32x16xf32, #tpu.memory_space<vmem>>, vector<32x16xf32>
    %cst_8 = arith.constant dense<0.000000e+00> : vector<16x16xf32>
    %12 = tpu.matmul %10, %11, %cst_8 {dimension_numbers = #tpu.dot_dimension_numbers<[1], [0], [0], [1], [0, 0, 1, 1], [], []>} : vector<16x32xf32>, vector<32x16xf32>, vector<16x16xf32> -> vector<16x16xf32>
    %c0_9 = arith.constant 0 : index
    %c0_10 = arith.constant 0 : index
    %13 = vector.load %arg5[%c0_9, %c0_10] : memref<1x16xf32, #tpu.memory_space<vmem>>, vector<1x16xf32>
    %14 = vector.broadcast %13 : vector<1x16xf32> to vector<16x16xf32>
    %15 = arith.addf %12, %14 : vector<16x16xf32>
    %16 = arith.negf %15 : vector<16x16xf32>
    %17 = math.exp %16 : vector<16x16xf32>
    %cst_11 = arith.constant 1.000000e+00 : f32
    %18 = vector.broadcast %cst_11 : f32 to vector<16x16xf32>
    %19 = arith.addf %18, %17 : vector<16x16xf32>
    %20 = arith.divf %18, %19 : vector<16x16xf32>
    %c0_12 = arith.constant 0 : index
    %c0_13 = arith.constant 0 : index
    %21 = vector.load %arg6[%c0_12, %c0_13] : memref<1x16xf32, #tpu.memory_space<vmem>>, vector<1x16xf32>
    %cst_14 = arith.constant dense<0.000000e+00> : vector<1x16xf32>
    %22 = tpu.matmul %21, %20, %cst_14 {dimension_numbers = #tpu.dot_dimension_numbers<[1], [1], [0], [0], [0, 0, 1, 0], [], []>} : vector<1x16xf32>, vector<16x16xf32>, vector<1x16xf32> -> vector<1x16xf32>
    %c0_15 = arith.constant 0 : index
    %c0_16 = arith.constant 0 : index
    %23 = vector.load %arg7[%c0_15, %c0_16] : memref<1x1xf32, #tpu.memory_space<vmem>>, vector<1x1xf32>
    %24 = vector.broadcast %23 : vector<1x1xf32> to vector<1x16xf32>
    %25 = arith.addf %22, %24 : vector<1x16xf32>
    %c0_17 = arith.constant 0 : index
    %c0_18 = arith.constant 0 : index
    %26 = vector.load %arg8[%c0_17, %c0_18] : memref<1x16xf32, #tpu.memory_space<vmem>>, vector<1x16xf32>
    tpu.vector_store %arg8[%c0_17, %c0_18], %25 {strides = array<i32>} : memref<1x16xf32, #tpu.memory_space<vmem>>, vector<1x16xf32>,
    return
  }
  func.func @transform_0(%arg0: i32) -> (i32, i32) {
    %c0_i32 = arith.constant 0 : i32
    %c0_i32_0 = arith.constant 0 : i32
    return %arg0, %c0_i32 : i32, i32
  }
  func.func @transform_1(%arg0: i32) -> (i32, i32) {
    %c0_i32 = arith.constant 0 : i32
    %c0_i32_0 = arith.constant 0 : i32
    %c0_i32_1 = arith.constant 0 : i32
    return %c0_i32, %c0_i32_0 : i32, i32
  }
  func.func @transform_2(%arg0: i32) -> (i32, i32) {
    %c0_i32 = arith.constant 0 : i32
    %c0_i32_0 = arith.constant 0 : i32
    %c0_i32_1 = arith.constant 0 : i32
    return %c0_i32, %c0_i32_0 : i32, i32
  }
  func.func @transform_3(%arg0: i32) -> (i32, i32) {
    %c0_i32 = arith.constant 0 : i32
    %c0_i32_0 = arith.constant 0 : i32
    %c0_i32_1 = arith.constant 0 : i32
    return %c0_i32, %c0_i32_0 : i32, i32
  }
  func.func @transform_4(%arg0: i32) -> (i32, i32) {
    %c0_i32 = arith.constant 0 : i32
    %c0_i32_0 = arith.constant 0 : i32
    %c0_i32_1 = arith.constant 0 : i32
    return %c0_i32, %c0_i32_0 : i32, i32
  }
  func.func @transform_5(%arg0: i32) -> (i32, i32) {
    %c0_i32 = arith.constant 0 : i32
    %c0_i32_0 = arith.constant 0 : i32
    %c0_i32_1 = arith.constant 0 : i32
    return %c0_i32, %c0_i32_0 : i32, i32
  }
  func.func @transform_6(%arg0: i32) -> (i32, i32) {
    %c0_i32 = arith.constant 0 : i32
    %c0_i32_0 = arith.constant 0 : i32
    %c0_i32_1 = arith.constant 0 : i32
    return %c0_i32, %c0_i32_0 : i32, i32
  }
  func.func @transform_7(%arg0: i32) -> (i32, i32) {
    %c0_i32 = arith.constant 0 : i32
    %c0_i32_0 = arith.constant 0 : i32
    return %c0_i32, %arg0 : i32, i32
  }
}

</mosaic_0001>

<llo_original>
// kernel: tpu_custom_call.1
$region0: #{tpu_custom_call.1}
  #allocation0 [shape = 'u32[]', space=smem, size = 0x4, offset = 0x4, fixed_abs, tag = 'smem constant byte address 0x4 - core index']
  #allocation1 [shape = 'u32[72,128]{1,0:T(1,128)}', space=vmem, size = 0x9000, scoped, tag = 'internal scratch']
  #allocation2 [shape = 'f32[1,1]{1,0:T(1,128)S(1)}', space=vmem, size = 0x200, scoped, tag = 'scoped memory for tpu_custom_call.1']
  %s0 = inlined_call_operand.vmem [shape: f32[16,16], index: 0, kind: input, shape index: {}]
  %s1 = inlined_call_operand.vmem [shape: f32[16,32], index: 1, kind: input, shape index: {}]
  %s2 = inlined_call_operand.vmem [shape: f32[1,32], index: 2, kind: input, shape index: {}]
  %s3 = inlined_call_operand.vmem [shape: f32[32,16], index: 3, kind: input, shape index: {}]
  %s4 = inlined_call_operand.vmem [shape: f32[1,16], index: 4, kind: input, shape index: {}]
  %s5 = inlined_call_operand.vmem [shape: f32[1,16], index: 5, kind: input, shape index: {}]
  %s6 = inlined_call_operand.<no memory space> [shape: f32[1,1], index: 6, kind: input, shape index: {}]
  %s7 = inlined_call_operand.hbm [shape: f32[1,16], index: 7, kind: output, shape index: {}]
  %s8 = sld [smem:[#allocation0]]
  $region38: #{tpu_custom_call.1} parent=0
    _
  %s10 = ssub.s32 1, %s8
  %s11 = scalar_select 0, %s10, %s8
  %v12 = vstv %s6
  %13 = vst [vmem:[#allocation2] sm:$0x1] %v12
  $region1: #{tpu_custom_call.1} parent=0
    #allocation3 [shape = 'u8[512]{0}', space=vmem, size = 0x400, scoped, tag = 'output window, operand 0, single buffered']
    #allocation4 [shape = 's32[1]{0}', space=sflag, size = 0x4, scoped, tag = 'scoped memory for tpu_custom_call.1']
    %14 = vsyncpa [#allocation4], 0
    // Predicated region
    $region2: #{tpu_custom_call.1} parent=1 // pred_check
      _
    $region3: #{tpu_custom_call.1} parent=1 // pred_check_branch
      %16 = sbr.rel (0) target = $region5
    $region4: #{tpu_custom_call.1} parent=1 // pred_region
      _
    $region5: #{tpu_custom_call.1} parent=1 // pred_fallthru
      _
    // Predicated region
    $region6: #{tpu_custom_call.1} parent=1 // pred_check
      _
    $region7: #{tpu_custom_call.1} parent=1 // pred_check_branch
      %18 = sbr.rel (0) target = $region9
    $region8: #{tpu_custom_call.1} parent=1 // pred_region
      _
    $region9: #{tpu_custom_call.1} parent=1 // pred_fallthru
      _
    // Predicated region
    $region10: #{tpu_custom_call.1} parent=1 // pred_check
      _
    $region11: #{tpu_custom_call.1} parent=1 // pred_check_branch
      %20 = sbr.rel (0) target = $region13
    $region12: #{tpu_custom_call.1} parent=1 // pred_region
      _
    $region13: #{tpu_custom_call.1} parent=1 // pred_fallthru
      _
    // Predicated region
    $region14: #{tpu_custom_call.1} parent=1 // pred_check
      _
    $region15: #{tpu_custom_call.1} parent=1 // pred_check_branch
      %22 = sbr.rel (0) target = $region17
    $region16: #{tpu_custom_call.1} parent=1 // pred_region
      _
    $region17: #{tpu_custom_call.1} parent=1 // pred_fallthru
      _
    // Predicated region
    $region18: #{tpu_custom_call.1} parent=1 // pred_check
      _
    $region19: #{tpu_custom_call.1} parent=1 // pred_check_branch
      %24 = sbr.rel (0) target = $region21
    $region20: #{tpu_custom_call.1} parent=1 // pred_region
      _
    $region21: #{tpu_custom_call.1} parent=1 // pred_fallthru
      _
    // Predicated region
    $region22: #{tpu_custom_call.1} parent=1 // pred_check
      _
    $region23: #{tpu_custom_call.1} parent=1 // pred_check_branch
      %26 = sbr.rel (0) target = $region25
    $region24: #{tpu_custom_call.1} parent=1 // pred_region
      _
    $region25: #{tpu_custom_call.1} parent=1 // pred_fallthru
      _
    // Predicated region
    $region26: #{tpu_custom_call.1} parent=1 // pred_check
      _
    $region27: #{tpu_custom_call.1} parent=1 // pred_check_branch
      %28 = sbr.rel (0) target = $region29
    $region28: #{tpu_custom_call.1} parent=1 // pred_region
      _
    $region29: #{tpu_custom_call.1} parent=1 // pred_fallthru
      _
    %v29 = vld [vmem:[%s0] sm:$0xff]
    %v30 = vld [vmem:[%s0 + $0x8] sm:$0xff]
    %v31 = vld [vmem:[%s1] sm:$0xff]
    %v32 = vld [vmem:[%s1 + $0x8] sm:$0xff]
    %v33 = vld [vmem:[%s2] sm:$0x1]
    %v35 = vperm.slane %v33, 0
    %vm37 = vcmask 130048
    %v39 = vsel %vm37, %v29, 0
    %v42 = vsel %vm37, %v30, 0
    %44 = vmatpush.msra.mxu0 0.0
    %45 = vmatpush.msra.mxu0 0.0
    %46 = vmatpush.msra.mxu0 0.0
    %47 = vmatpush.msra.mxu0 0.0
    %48 = vmatpush.msra.mxu0 0.0
    %49 = vmatpush.msra.mxu0 0.0
    %50 = vmatpush.msra.mxu0 0.0
    %51 = vmatpush.msra.mxu0 0.0
    %52 = vmatpush.msra.mxu0 0.0
    %53 = vmatpush.msra.mxu0 0.0
    %54 = vmatpush.msra.mxu0 0.0
    %55 = vmatpush.msra.mxu0 0.0
    %56 = vmatpush.msra.mxu0 0.0
    %57 = vmatpush.msra.mxu0 0.0
    %58 = vmatpush.msra.mxu0 %v32
    %59 = vmatpush.msra.mxu0 %v31
    %60 = vmatmul.f32.gmra.mxu0 %v39
    %v61 = vpop.f32.mrf.mxu0
    %v62 = vadd.f32 %v35, %v61
    %63 = vmatmul.f32.gmra.mxu0 %v42
    %v64 = vpop.f32.mrf.mxu0
    %v65 = vadd.f32 %v35, %v64
    %66 = vdwg.mxu0
    %v67 = vxor.u32 %v62, 2147483648
    %v68 = vxor.u32 %v65, 2147483648
    %v69 = vmul.f32 %v67, 1.442695
    %v70 = vpow.pop %v69
    %v71 = vmul.f32 %v68, 1.442695
    %v72 = vpow.pop %v71
    %v73 = vadd.f32 %v70, 1.0
    %v74 = vadd.f32 %v72, 1.0
    %v75 = vrcp.pop %v73
    %v76 = vmul.f32 %v73, %v75
    %v77 = vsub.f32 1.0, %v76
    %v78 = vmul.f32 %v75, %v77
    %v79 = vadd.f32 %v75, %v78
    %vm80 = vweird.f32 %v73
    %vm81 = vweird.f32 %v75
    %vm82 = vmor %vm80, %vm81
    %v83 = vsel %vm82, %v75, %v79
    %v84 = vand.u32 2147483647, %v73
    %vm85 = vcmp.eq.f32.partialorder %v84, 8.507059e+37
    %v86 = vand.u32 %v73, 2147483648
    %v87 = vor.u32 1.1754944e-38, %v86
    %v88 = vsel %vm85, %v87, %v83
    %v89 = vmul.f32 1.0, %v88
    %v90 = vrcp.pop %v74
    %v91 = vmul.f32 %v74, %v90
    %v92 = vsub.f32 1.0, %v91
    %v93 = vmul.f32 %v90, %v92
    %v94 = vadd.f32 %v90, %v93
    %vm95 = vweird.f32 %v74
    %vm96 = vweird.f32 %v90
    %vm97 = vmor %vm95, %vm96
    %v98 = vsel %vm97, %v90, %v94
    %v99 = vand.u32 2147483647, %v74
    %vm100 = vcmp.eq.f32.partialorder %v99, 8.507059e+37
    %v101 = vand.u32 %v74, 2147483648
    %v102 = vor.u32 1.1754944e-38, %v101
    %v103 = vsel %vm100, %v102, %v98
    %v104 = vmul.f32 1.0, %v103
    %v105 = vld [vmem:[%s3] sm:$0xff]
    %v106 = vld [vmem:[%s3 + $0x8] sm:$0xff]
    %v107 = vld [vmem:[%s3 + $0x10] sm:$0xff]
    %v108 = vld [vmem:[%s3 + $0x18] sm:$0xff]
    %v109 = vld [vmem:[%s4] sm:$0x1]
    %v111 = vperm.slane %v109, 0
    %vm113 = vcmask 261120
    %v115 = vsel %vm113, %v89, 0
    %v118 = vsel %vm113, %v104, 0
    %120 = vmatpush.msra.mxu0 0.0
    %121 = vmatpush.msra.mxu0 0.0
    %122 = vmatpush.msra.mxu0 0.0
    %123 = vmatpush.msra.mxu0 0.0
    %124 = vmatpush.msra.mxu0 0.0
    %125 = vmatpush.msra.mxu0 0.0
    %126 = vmatpush.msra.mxu0 0.0
    %127 = vmatpush.msra.mxu0 0.0
    %128 = vmatpush.msra.mxu0 0.0
    %129 = vmatpush.msra.mxu0 0.0
    %130 = vmatpush.msra.mxu0 0.0
    %131 = vmatpush.msra.mxu0 0.0
    %132 = vmatpush.msra.mxu0 %v108
    %133 = vmatpush.msra.mxu0 %v107
    %134 = vmatpush.msra.mxu0 %v106
    %135 = vmatpush.msra.mxu0 %v105
    %136 = vmatmul.f32.gmra.mxu0 %v115
    %v137 = vpop.f32.mrf.mxu0
    %v138 = vadd.f32 %v111, %v137
    %139 = vmatmul.f32.gmra.mxu0 %v118
    %v140 = vpop.f32.mrf.mxu0
    %v141 = vadd.f32 %v111, %v140
    %142 = vdwg.mxu0
    %v143 = vxor.u32 %v138, 2147483648
    %v144 = vxor.u32 %v141, 2147483648
    %v145 = vmul.f32 %v143, 1.442695
    %v146 = vpow.pop %v145
    %v147 = vmul.f32 %v144, 1.442695
    %v148 = vpow.pop %v147
    %v149 = vadd.f32 %v146, 1.0
    %v150 = vadd.f32 %v148, 1.0
    %v151 = vrcp.pop %v149
    %v152 = vmul.f32 %v149, %v151
    %v153 = vsub.f32 1.0, %v152
    %v154 = vmul.f32 %v151, %v153
    %v155 = vadd.f32 %v151, %v154
    %vm156 = vweird.f32 %v149
    %vm157 = vweird.f32 %v151
    %vm158 = vmor %vm156, %vm157
    %v159 = vsel %vm158, %v151, %v155
    %v160 = vand.u32 2147483647, %v149
    %vm161 = vcmp.eq.f32.partialorder %v160, 8.507059e+37
    %v162 = vand.u32 %v149, 2147483648
    %v163 = vor.u32 1.1754944e-38, %v162
    %v164 = vsel %vm161, %v163, %v159
    %v165 = vmul.f32 1.0, %v164
    %v166 = vrcp.pop %v150
    %v167 = vmul.f32 %v150, %v166
    %v168 = vsub.f32 1.0, %v167
    %v169 = vmul.f32 %v166, %v168
    %v170 = vadd.f32 %v166, %v169
    %vm171 = vweird.f32 %v150
    %vm172 = vweird.f32 %v166
    %vm173 = vmor %vm171, %vm172
    %v174 = vsel %vm173, %v166, %v170
    %v175 = vand.u32 2147483647, %v150
    %vm176 = vcmp.eq.f32.partialorder %v175, 8.507059e+37
    %v177 = vand.u32 %v150, 2147483648
    %v178 = vor.u32 1.1754944e-38, %v177
    %v179 = vsel %vm176, %v178, %v174
    %v180 = vmul.f32 1.0, %v179
    %v181 = vld [vmem:[%s5] sm:$0x1]
    %v182 = vld [vmem:[#allocation2] sm:$0x1]
    %184 = vset.pattern.permute.xlu0 0
    %185 = vperm.xlu0 %184, %v182
    %v186 = vpop.permute.xlu0 %185
    %v188 = vperm.slane %v186, 0
    %v190 = vsel %vm37, %v181, 0
    %v193 = vsel %vm37, %v165, 0
    %v196 = vsel %vm37, %v180, 0
    %198 = vmatpush.xpose.msra.mxu0 0.0
    %199 = vmatpush.xpose.msra.mxu0 0.0
    %200 = vmatpush.xpose.msra.mxu0 0.0
    %201 = vmatpush.xpose.msra.mxu0 0.0
    %202 = vmatpush.xpose.msra.mxu0 0.0
    %203 = vmatpush.xpose.msra.mxu0 0.0
    %204 = vmatpush.xpose.msra.mxu0 0.0
    %205 = vmatpush.xpose.msra.mxu0 0.0
    %206 = vmatpush.xpose.msra.mxu0 0.0
    %207 = vmatpush.xpose.msra.mxu0 0.0
    %208 = vmatpush.xpose.msra.mxu0 0.0
    %209 = vmatpush.xpose.msra.mxu0 0.0
    %210 = vmatpush.xpose.msra.mxu0 0.0
    %211 = vmatpush.xpose.msra.mxu0 0.0
    %212 = vmatpush.xpose.msra.mxu0 %v196
    %213 = vmatpush.xpose.msra.mxu0 %v193
    %214 = vmatmul.f32.gmra.mxu0 %v190
    %v215 = vpop.f32.mrf.mxu0
    %v216 = vadd.f32 %v188, %v215
    %217 = vdwg.mxu0
    %vm218 = vcmask 122880
    %219 = vst.msk [vmem:[#allocation3] sm:$0x1] %vm218, %v216
    // Predicated region
    $region30: #{tpu_custom_call.1} parent=1 // pred_check
      _
    $region31: #{tpu_custom_call.1} parent=1 // pred_check_branch
      %221 = sbr.rel (0) target = $region33
    $region32: #{tpu_custom_call.1} parent=1 // pred_region
      %223 = vsyncadd [#allocation4], 0
      %s225 = sshll.u32 [#allocation3], 4
      %s226 = int_to_ptr.vmem [resolvable:$true] %s225
      %s227 = sshll.u32 %s7, 4
      %s228 = int_to_ptr.hbm [resolvable:$true] %s227
      %230 = dma.vmem_to_hbm [thread:$0]  %s226, 16, %s228, [#allocation4]
    $region33: #{tpu_custom_call.1} parent=1 // pred_fallthru
      _
    // Predicated region
    $region34: #{tpu_custom_call.1} parent=1 // pred_check
      _
    $region35: #{tpu_custom_call.1} parent=1 // pred_check_branch
      %232 = sbr.rel (0) target = $region37
    $region36: #{tpu_custom_call.1} parent=1 // pred_region
      %234 = dma.done [#allocation4], 16
    $region37: #{tpu_custom_call.1} parent=1 // pred_fallthru
      _
    %235 = vsyncpa [#allocation4], 1

</llo_original>
